<compile_context>
chip_gen: v7x
topology: tpu7x:2x2x1
jax: 0.10.0
libtpu: 0.0.40
codegen_flags: <defaults>
</compile_context>

<pallas_src>
import functools
import math

import jax
import jax.numpy as jnp
from jax import lax
from jax.experimental import pallas as pl
from jax.experimental.pallas import tpu as pltpu

_LANE = 128


def _rotary_kernel(*refs, tile_rows, compute_width, dedup, use_xpos):
    """Write one (tile_rows, width) slab of freqs (and scale, if use_xpos)."""
    if use_xpos:
        fmul, fadd, smul, sadd, freqs_out, scale_out = refs
    else:
        fmul, fadd, freqs_out = refs

    r0 = pl.program_id(0) * tile_rows
    row = lax.broadcasted_iota(jnp.int32, (tile_rows, compute_width), 0)
    r_glob = (row + r0).astype(jnp.float32)            # slab-row index, f32 math

    def store(out_ref, vals):
        v = vals.astype(out_ref.dtype)
        if dedup:
            # Output is concat(v, v): compute the unique half, store it twice.
            out_ref[:, :compute_width] = v
            out_ref[:, compute_width:] = v
        else:
            out_ref[...] = v

    store(freqs_out, r_glob * fmul[...] + fadd[...])
    if use_xpos:
        store(scale_out, jnp.exp(r_glob * smul[...] + sadd[...]))


def _round_up(x, m):
    return -(-x // m) * m


def _layout(seq_len, dim, dtype, n_outputs):
    """Pick slab packing, tile size and padded row count."""
    itemsize = jnp.dtype(dtype).itemsize
    sub = max(8, 32 // itemsize)                      # 8 (f32), 16 (bf16), 32 (i8)

    pack = _LANE // math.gcd(dim, _LANE)              # slab width = lcm(dim, 128)
    width = pack * dim                                # always a multiple of 128
    dedup = (pack == 1) and (width % 256 == 0)        # dim % 256 == 0
    compute_width = width // 2 if dedup else width

    n_rows = -(-seq_len // pack)                      # logical slab rows (ceil)

    # Per-output-block VMEM budget: n_outputs x 2 buffers x block ~= 16 MiB total.
    per_block_bytes = (16 << 20) // (2 * n_outputs)
    bytes_per_row = width * itemsize
    budget_rows = max(sub, (per_block_bytes // bytes_per_row) // sub * sub)

    if n_rows <= sub:
        tile_rows = n_rows                            # block == full array (allowed)
    elif budget_rows >= n_rows:
        # Whole output fits in one block: split into 2 grid steps so the
        # "parallel" axis can be sharded across v7x's 2 TensorCores.
        tile_rows = _round_up(-(-n_rows // 2), sub)
    else:
        tile_rows = budget_rows

    n_steps = -(-n_rows // tile_rows)
    n_rows_padded = n_steps * tile_rows               # no ragged last block
    return pack, width, compute_width, dedup, n_rows_padded, tile_rows, n_steps


def rotary_embedding(seq_len, dim, *, scale_base=512, use_xpos=True,
                     dtype=jnp.float32):
    """Pallas equivalent of RotaryEmbedding(dim, scale_base, use_xpos)(seq_len)."""
    assert dim % 2 == 0, "RotaryEmbedding requires an even dim"
    n_out = 2 if use_xpos else 1
    (pack, width, compute_width, dedup,
     n_rows_padded, tile_rows, n_steps) = _layout(seq_len, dim, dtype, n_out)

    # ---- parameter rows (f32, built once outside the kernel) -----------------
    arange_half = jnp.arange(0, dim, 2, dtype=jnp.float32)          # (dim/2,)
    inv_freq = 1.0 / (10000.0 ** (arange_half / dim))               # (dim/2,)
    scale_p = (arange_half + 0.4 * dim) / (1.4 * dim)               # (dim/2,) > 0
    log_scale = jnp.log(scale_p)
    half_shift = jnp.float32(seq_len // 2)

    if dedup:
        # pack == 1 and dim % 256 == 0: only the unique half of each row.
        q = jnp.zeros((compute_width,), jnp.float32)
        inv_freq_row = inv_freq
        log_scale_row = log_scale
        eff_pack = 1.0
    else:
        inv_freq_full = jnp.concatenate([inv_freq, inv_freq])       # (dim,)
        log_scale_full = jnp.concatenate([log_scale, log_scale])    # (dim,)
        q = jnp.repeat(jnp.arange(pack, dtype=jnp.float32), dim)    # lane // dim
        inv_freq_row = jnp.tile(inv_freq_full, pack)                # (width,)
        log_scale_row = jnp.tile(log_scale_full, pack)              # (width,)
        eff_pack = float(pack)

    # t = r_glob * pack + (lane // dim); all lane terms folded into mul/add rows.
    freq_mul = (eff_pack * inv_freq_row).reshape(1, compute_width)
    freq_add = (q * inv_freq_row).reshape(1, compute_width)
    scale_mul = (eff_pack * log_scale_row / scale_base).reshape(1, compute_width)
    scale_add = ((q - half_shift) * log_scale_row / scale_base).reshape(
        1, compute_width)

    grid = (n_steps,)
    param_spec = pl.BlockSpec((1, compute_width), lambda i: (0, 0))
    out_spec = pl.BlockSpec((tile_rows, width), lambda i: (i, 0))
    cparams = pltpu.CompilerParams(
        dimension_semantics=("parallel",),
        vmem_limit_bytes=32 * 1024 * 1024,
    )
    kernel = functools.partial(
        _rotary_kernel, tile_rows=tile_rows, compute_width=compute_width,
        dedup=dedup, use_xpos=use_xpos)

    if use_xpos:
        freqs_slab, scale_slab = pl.pallas_call(
            kernel,
            grid=grid,
            out_shape=(
                jax.ShapeDtypeStruct((n_rows_padded, width), dtype),
                jax.ShapeDtypeStruct((n_rows_padded, width), dtype),
            ),
            in_specs=[param_spec, param_spec, param_spec, param_spec],
            out_specs=(out_spec, out_spec),
            compiler_params=cparams,
        )(freq_mul, freq_add, scale_mul, scale_add)
        freqs = freqs_slab.reshape(-1, dim)[:seq_len]
        scale = scale_slab.reshape(-1, dim)[:seq_len]
        return freqs, scale

    # Non-xpos path: freqs-only kernel, no discarded scale compute/writes.
    freqs_slab = pl.pallas_call(
        kernel,
        grid=grid,
        out_shape=jax.ShapeDtypeStruct((n_rows_padded, width), dtype),
        in_specs=[param_spec, param_spec],
        out_specs=out_spec,
        compiler_params=cparams,
    )(freq_mul, freq_add)
    freqs = freqs_slab.reshape(-1, dim)[:seq_len]
    return freqs, jnp.ones((1,), dtype=dtype)


def _reference(seq_len, dim, scale_base=512):
    # Pure-JAX reference replicating the PyTorch forward exactly.
    t = jnp.arange(seq_len, dtype=jnp.float32)
    arange_half = jnp.arange(0, dim, 2, dtype=jnp.float32)
    inv_freq = 1.0 / (10000.0 ** (arange_half / dim))
    freqs = jnp.einsum('i,j->ij', t, inv_freq)
    freqs = jnp.concatenate([freqs, freqs], axis=-1)
    power = (t - seq_len // 2) / scale_base
    scale_p = (arange_half + 0.4 * dim) / (1.4 * dim)
    scale = scale_p[None, :] ** power[:, None]
    scale = jnp.concatenate([scale, scale], axis=-1)
    return freqs, scale


if __name__ == "__main__":
    # The forward pass only consumes a sequence length; key kept for protocol.
    _ = jax.random.PRNGKey(0)

    # Small shape implied by the module (seq=8, hidden dim=32).
    seq_len, dim = 8, 32

    # xpos path
    freqs, scale = rotary_embedding(seq_len, dim, scale_base=512, use_xpos=True)
    jax.block_until_ready((freqs, scale))
    ref_freqs, ref_scale = _reference(seq_len, dim, scale_base=512)
    assert freqs.shape == (seq_len, dim) and scale.shape == (seq_len, dim)
    assert jnp.allclose(freqs, ref_freqs, atol=1e-5, rtol=1e-5)
    assert jnp.allclose(scale, ref_scale, atol=1e-5, rtol=1e-5)

    # non-xpos path
    freqs2, ones = rotary_embedding(seq_len, dim, scale_base=512, use_xpos=False)
    jax.block_until_ready((freqs2, ones))
    assert jnp.allclose(freqs2, ref_freqs, atol=1e-5, rtol=1e-5)
    assert ones.shape == (1,) and jnp.allclose(ones, 1.0)

    # Second (still-small) shape that exercises packing, row padding and a
    # multi-step "parallel" grid (seq_len not a multiple of pack, 2 grid steps).
    seq_len2, dim2 = 300, 64
    f3, s3 = rotary_embedding(seq_len2, dim2, scale_base=512, use_xpos=True)
    jax.block_until_ready((f3, s3))
    rf3, rs3 = _reference(seq_len2, dim2, scale_base=512)
    assert f3.shape == (seq_len2, dim2) and s3.shape == (seq_len2, dim2)
    assert jnp.allclose(f3, rf3, atol=1e-5, rtol=1e-5)
    assert jnp.allclose(s3, rs3, atol=1e-5, rtol=1e-5)

    print("KERNEL_OK")
</pallas_src>

<mosaic_0001>
module attributes {stable_mosaic.version = 11 : i64} {
  func.func @_rotary_kernel(%arg0: i32, %arg1: memref<1x128xf32, #tpu.memory_space<vmem>>, %arg2: memref<1x128xf32, #tpu.memory_space<vmem>>, %arg3: memref<1x128xf32, #tpu.memory_space<vmem>>, %arg4: memref<1x128xf32, #tpu.memory_space<vmem>>, %arg5: memref<2x128xf32, #tpu.memory_space<vmem>>, %arg6: memref<2x128xf32, #tpu.memory_space<vmem>>) attributes {dimension_semantics = [#tpu.dimension_semantics<parallel>], iteration_bounds = array<i64: 1>, scalar_prefetch = 0 : i64, scratch_operands = 0 : i64, tpu.core_type = #tpu.core_type<tc>, window_params = [{pipeline_mode = #tpu.pipeline_mode<synchronous>, transform_indices = @transform_0, window_bounds = array<i64: 1, 128>}, {pipeline_mode = #tpu.pipeline_mode<synchronous>, transform_indices = @transform_1, window_bounds = array<i64: 1, 128>}, {pipeline_mode = #tpu.pipeline_mode<synchronous>, transform_indices = @transform_2, window_bounds = array<i64: 1, 128>}, {pipeline_mode = #tpu.pipeline_mode<synchronous>, transform_indices = @transform_3, window_bounds = array<i64: 1, 128>}, {transform_indices = @transform_4, window_bounds = array<i64: 2, 128>}, {transform_indices = @transform_5, window_bounds = array<i64: 2, 128>}]} {
    %c2_i32 = arith.constant 2 : i32
    %0 = arith.muli %arg0, %c2_i32 : i32
    %1 = tpu.iota {dimensions = array<i32: 0>} : vector<2x128xi32>
    %2 = vector.broadcast %0 : i32 to vector<2x128xi32>
    %3 = arith.addi %1, %2 : vector<2x128xi32>
    %4 = arith.sitofp %3 : vector<2x128xi32> to vector<2x128xf32>
    %c0 = arith.constant 0 : index
    %c0_0 = arith.constant 0 : index
    %5 = vector.load %arg1[%c0, %c0_0] : memref<1x128xf32, #tpu.memory_space<vmem>>, vector<1x128xf32>
    %6 = vector.broadcast %5 : vector<1x128xf32> to vector<2x128xf32>
    %7 = arith.mulf %4, %6 : vector<2x128xf32>
    %c0_1 = arith.constant 0 : index
    %c0_2 = arith.constant 0 : index
    %8 = vector.load %arg2[%c0_1, %c0_2] : memref<1x128xf32, #tpu.memory_space<vmem>>, vector<1x128xf32>
    %9 = vector.broadcast %8 : vector<1x128xf32> to vector<2x128xf32>
    %10 = arith.addf %7, %9 : vector<2x128xf32>
    %c0_3 = arith.constant 0 : index
    %c0_4 = arith.constant 0 : index
    %11 = vector.load %arg5[%c0_3, %c0_4] : memref<2x128xf32, #tpu.memory_space<vmem>>, vector<2x128xf32>
    tpu.vector_store %arg5[%c0_3, %c0_4], %10 {strides = array<i32>} : memref<2x128xf32, #tpu.memory_space<vmem>>, vector<2x128xf32>,
    %c0_5 = arith.constant 0 : index
    %c0_6 = arith.constant 0 : index
    %12 = vector.load %arg3[%c0_5, %c0_6] : memref<1x128xf32, #tpu.memory_space<vmem>>, vector<1x128xf32>
    %13 = vector.broadcast %12 : vector<1x128xf32> to vector<2x128xf32>
    %14 = arith.mulf %4, %13 : vector<2x128xf32>
    %c0_7 = arith.constant 0 : index
    %c0_8 = arith.constant 0 : index
    %15 = vector.load %arg4[%c0_7, %c0_8] : memref<1x128xf32, #tpu.memory_space<vmem>>, vector<1x128xf32>
    %16 = vector.broadcast %15 : vector<1x128xf32> to vector<2x128xf32>
    %17 = arith.addf %14, %16 : vector<2x128xf32>
    %18 = math.exp %17 : vector<2x128xf32>
    %c0_9 = arith.constant 0 : index
    %c0_10 = arith.constant 0 : index
    %19 = vector.load %arg6[%c0_9, %c0_10] : memref<2x128xf32, #tpu.memory_space<vmem>>, vector<2x128xf32>
    tpu.vector_store %arg6[%c0_9, %c0_10], %18 {strides = array<i32>} : memref<2x128xf32, #tpu.memory_space<vmem>>, vector<2x128xf32>,
    return
  }
  func.func @transform_0(%arg0: i32) -> (i32, i32) {
    %c0_i32 = arith.constant 0 : i32
    %c0_i32_0 = arith.constant 0 : i32
    %c0_i32_1 = arith.constant 0 : i32
    return %c0_i32, %c0_i32_0 : i32, i32
  }
  func.func @transform_1(%arg0: i32) -> (i32, i32) {
    %c0_i32 = arith.constant 0 : i32
    %c0_i32_0 = arith.constant 0 : i32
    %c0_i32_1 = arith.constant 0 : i32
    return %c0_i32, %c0_i32_0 : i32, i32
  }
  func.func @transform_2(%arg0: i32) -> (i32, i32) {
    %c0_i32 = arith.constant 0 : i32
    %c0_i32_0 = arith.constant 0 : i32
    %c0_i32_1 = arith.constant 0 : i32
    return %c0_i32, %c0_i32_0 : i32, i32
  }
  func.func @transform_3(%arg0: i32) -> (i32, i32) {
    %c0_i32 = arith.constant 0 : i32
    %c0_i32_0 = arith.constant 0 : i32
    %c0_i32_1 = arith.constant 0 : i32
    return %c0_i32, %c0_i32_0 : i32, i32
  }
  func.func @transform_4(%arg0: i32) -> (i32, i32) {
    %c0_i32 = arith.constant 0 : i32
    %c0_i32_0 = arith.constant 0 : i32
    return %arg0, %c0_i32 : i32, i32
  }
  func.func @transform_5(%arg0: i32) -> (i32, i32) {
    %c0_i32 = arith.constant 0 : i32
    %c0_i32_0 = arith.constant 0 : i32
    return %arg0, %c0_i32 : i32, i32
  }
}

</mosaic_0001>

<llo_original>
// kernel: tpu_custom_call.1
$region0: #{tpu_custom_call.1}
  #allocation0 [shape = 'u32[]', space=smem, size = 0x4, offset = 0x4, fixed_abs, tag = 'smem constant byte address 0x4 - core index']
  #allocation1 [shape = 'u32[144,128]{1,0:T(1,128)}', space=vmem, size = 0x12000, scoped, tag = 'internal scratch']
  %s0 = inlined_call_operand.hbm [shape: f32[1,128], index: 0, kind: input, shape index: {}]
  %s1 = inlined_call_operand.vmem [shape: f32[1,128], index: 1, kind: input, shape index: {}]
  %s2 = inlined_call_operand.vmem [shape: f32[1,128], index: 2, kind: input, shape index: {}]
  %s3 = inlined_call_operand.vmem [shape: f32[1,128], index: 3, kind: input, shape index: {}]
  %s4 = inlined_call_operand.hbm [shape: f32[2,128], index: 4, kind: output, shape index: {0}]
  %s5 = inlined_call_operand.hbm [shape: f32[2,128], index: 5, kind: output, shape index: {1}]
  %6 = xla_tuple %s4, %s5
  %s7 = sld [smem:[#allocation0]]
  $region38: #{tpu_custom_call.1} parent=0
    _
  %s9 = ssub.s32 1, %s7
  %s10 = scalar_select 0, %s9, %s7
  $region1: #{tpu_custom_call.1} parent=0
    #allocation2 [shape = 'u8[512]{0}', space=vmem, size = 0x400, scoped, tag = 'input window, operand 0, single buffered']
    #allocation3 [shape = 's32[1]{0}', space=sflag, size = 0x4, scoped, tag = 'scoped memory for tpu_custom_call.1']
    #allocation4 [shape = 's32[1]{0}', space=sflag, size = 0x4, scoped, tag = 'scoped memory for tpu_custom_call.1']
    #allocation5 [shape = 'u8[1024]{0}', space=vmem, size = 0x400, scoped, tag = 'output window, operand 0, single buffered']
    #allocation6 [shape = 'u8[1024]{0}', space=vmem, size = 0x400, scoped, tag = 'output window, operand 1, single buffered']
    #allocation7 [shape = 's32[1]{0}', space=sflag, size = 0x4, scoped, tag = 'scoped memory for tpu_custom_call.1']
    %11 = vsyncpa [#allocation3], 0
    %12 = vsyncpa [#allocation4], 0
    %13 = vsyncpa [#allocation7], 0
    // Predicated region
    $region2: #{tpu_custom_call.1} parent=1 // pred_check
      _
    $region3: #{tpu_custom_call.1} parent=1 // pred_check_branch
      %15 = sbr.rel (0) target = $region5
    $region4: #{tpu_custom_call.1} parent=1 // pred_region
      %s17 = ssub.s32 16, 16
      %18 = vsyncadd [#allocation3], %s17
      %s20 = sshll.u32 [#allocation2], 4
      %s21 = int_to_ptr.vmem [resolvable:$true] %s20
      %23 = dma.hbm_to_vmem [thread:$0]  %s0, 16, %s21, [#allocation3]
    $region5: #{tpu_custom_call.1} parent=1 // pred_fallthru
      _
    // Predicated region
    $region6: #{tpu_custom_call.1} parent=1 // pred_check
      _
    $region7: #{tpu_custom_call.1} parent=1 // pred_check_branch
      %25 = sbr.rel (0) target = $region9
    $region8: #{tpu_custom_call.1} parent=1 // pred_region
      _
    $region9: #{tpu_custom_call.1} parent=1 // pred_fallthru
      _
    // Predicated region
    $region10: #{tpu_custom_call.1} parent=1 // pred_check
      _
    $region11: #{tpu_custom_call.1} parent=1 // pred_check_branch
      %27 = sbr.rel (0) target = $region13
    $region12: #{tpu_custom_call.1} parent=1 // pred_region
      _
    $region13: #{tpu_custom_call.1} parent=1 // pred_fallthru
      _
    // Predicated region
    $region14: #{tpu_custom_call.1} parent=1 // pred_check
      _
    $region15: #{tpu_custom_call.1} parent=1 // pred_check_branch
      %29 = sbr.rel (0) target = $region17
    $region16: #{tpu_custom_call.1} parent=1 // pred_region
      _
    $region17: #{tpu_custom_call.1} parent=1 // pred_fallthru
      _
    // Predicated region
    $region18: #{tpu_custom_call.1} parent=1 // pred_check
      _
    $region19: #{tpu_custom_call.1} parent=1 // pred_check_branch
      %31 = sbr.rel (0) target = $region21
    $region20: #{tpu_custom_call.1} parent=1 // pred_region
      %32 = dma.done [#allocation3], 16
    $region21: #{tpu_custom_call.1} parent=1 // pred_fallthru
      _
    %s33 = smul.u32 0, 2
    %v34 = vlaneseq
    %v35 = vshrl.u32 %v34, 7
    %v36 = vstv %s33
    %v37 = vadd.s32 %v35, %v36
    %v38 = vcvt.s32.f32 %v37
    %v39 = vld [vmem:[#allocation2] sm:$0x1]
    %v41 = vlaneseq
    %v42 = vshrl.u32 %v41, 7
    %v43 = vsub.s32 0, %v42
    %v44 = vrot.slane %v39, %v43
    %v46 = vmul.f32 %v38, %v44
    %v47 = vld [vmem:[%s1] sm:$0x1]
    %v49 = vlaneseq
    %v50 = vshrl.u32 %v49, 7
    %v51 = vsub.s32 0, %v50
    %v52 = vrot.slane %v47, %v51
    %v54 = vadd.f32 %v46, %v52
    %55 = vst [vmem:[#allocation5] sm:$0x3] %v54
    %v56 = vld [vmem:[%s2] sm:$0x1]
    %v58 = vlaneseq
    %v59 = vshrl.u32 %v58, 7
    %v60 = vsub.s32 0, %v59
    %v61 = vrot.slane %v56, %v60
    %v63 = vmul.f32 %v38, %v61
    %v64 = vld [vmem:[%s3] sm:$0x1]
    %v66 = vlaneseq
    %v67 = vshrl.u32 %v66, 7
    %v68 = vsub.s32 0, %v67
    %v69 = vrot.slane %v64, %v68
    %v71 = vadd.f32 %v63, %v69
    %v72 = vmul.f32 %v71, 1.442695
    %v73 = vpow.pop %v72
    %74 = vst [vmem:[#allocation6] sm:$0x3] %v73
    // Predicated region
    $region22: #{tpu_custom_call.1} parent=1 // pred_check
      _
    $region23: #{tpu_custom_call.1} parent=1 // pred_check_branch
      %76 = sbr.rel (0) target = $region25
    $region24: #{tpu_custom_call.1} parent=1 // pred_region
      %s78 = ssub.s32 32, 32
      %79 = vsyncadd [#allocation4], %s78
      %s81 = sshll.u32 [#allocation5], 4
      %s82 = int_to_ptr.vmem [resolvable:$true] %s81
      %84 = dma.vmem_to_hbm [thread:$0]  %s82, 32, %s4, [#allocation4]
    $region25: #{tpu_custom_call.1} parent=1 // pred_fallthru
      _
    // Predicated region
    $region26: #{tpu_custom_call.1} parent=1 // pred_check
      _
    $region27: #{tpu_custom_call.1} parent=1 // pred_check_branch
      %86 = sbr.rel (0) target = $region29
    $region28: #{tpu_custom_call.1} parent=1 // pred_region
      %s88 = ssub.s32 32, 32
      %89 = vsyncadd [#allocation7], %s88
      %s91 = sshll.u32 [#allocation6], 4
      %s92 = int_to_ptr.vmem [resolvable:$true] %s91
      %94 = dma.vmem_to_hbm [thread:$0]  %s92, 32, %s5, [#allocation7]
    $region29: #{tpu_custom_call.1} parent=1 // pred_fallthru
      _
    // Predicated region
    $region30: #{tpu_custom_call.1} parent=1 // pred_check
      _
    $region31: #{tpu_custom_call.1} parent=1 // pred_check_branch
      %96 = sbr.rel (0) target = $region33
    $region32: #{tpu_custom_call.1} parent=1 // pred_region
      %97 = dma.done [#allocation4], 32
    $region33: #{tpu_custom_call.1} parent=1 // pred_fallthru
      _
    // Predicated region
    $region34: #{tpu_custom_call.1} parent=1 // pred_check
      _
    $region35: #{tpu_custom_call.1} parent=1 // pred_check_branch
      %99 = sbr.rel (0) target = $region37
    $region36: #{tpu_custom_call.1} parent=1 // pred_region
      %100 = dma.done [#allocation7], 32
    $region37: #{tpu_custom_call.1} parent=1 // pred_fallthru
      _
    %101 = vsyncpa [#allocation3], 1
    %102 = vsyncpa [#allocation4], 1
    %103 = vsyncpa [#allocation7], 1

</llo_original>
